<compile_context>
chip_gen: v6e
topology: v6e:2x2x1
jax: 0.10.0
libtpu: 0.0.40
codegen_flags: <defaults>
</compile_context>

<pallas_src>
from functools import partial

import jax
import jax.numpy as jnp
from jax.experimental import pallas as pl
from jax.experimental.pallas import tpu as pltpu

_LANE = 128  # TPU lane width; output last dim padded to a multiple of this.
_SUBLANE = 8  # TPU sublane width; batch tile rounded to a multiple of this.


def _linear_kernel(x_ref, w_ref, b_ref, o_ref):
    # MXU matmul with f32 accumulation + single broadcast bias add on the VPU.
    acc = jnp.dot(x_ref[...], w_ref[...], preferred_element_type=jnp.float32)
    o_ref[...] = (acc + b_ref[...]).astype(o_ref.dtype)


@partial(jax.jit, static_argnames=("batch_tile",))
def linear_forward(x, w, b, *, batch_tile=512):
    """y = x @ w.T + b   (same semantics as torch.nn.Linear)

    x: (B, D) float32
    w: (O, D) float32   -- PyTorch nn.Linear weight layout
    b: (O,)   float32
    returns (B, O) float32
    """
    B, D = x.shape
    O, Dw = w.shape
    assert Dw == D, "weight in_features must match x last dim"

    # --- lane-dense padding of the output dimension (sliced off at the end) ---
    O_pad = ((O + _LANE - 1) // _LANE) * _LANE
    w_t = jnp.zeros((D, O_pad), dtype=x.dtype).at[:, :O].set(w.T.astype(x.dtype))
    b_row = jnp.zeros((1, O_pad), dtype=x.dtype).at[0, :O].set(b.astype(x.dtype))

    # --- shape-gated batch tiling (sublane-aligned) ---
    tb = min(batch_tile, max(B, _SUBLANE))
    tb = ((tb + _SUBLANE - 1) // _SUBLANE) * _SUBLANE   # multiple of 8 sublanes
    B_pad = ((B + tb - 1) // tb) * tb
    if B_pad != B:
        x = jnp.zeros((B_pad, D), dtype=x.dtype).at[:B, :].set(x)

    grid = (B_pad // tb,)

    y_pad = pl.pallas_call(
        _linear_kernel,
        out_shape=jax.ShapeDtypeStruct((B_pad, O_pad), x.dtype),
        grid_spec=pl.GridSpec(
            grid=grid,
            in_specs=[
                # Batch-tiled activations; D kept as full-extent block dim.
                pl.BlockSpec((tb, D), lambda i: (i, 0)),
                # Weight and bias are small and resident across all grid steps.
                pl.BlockSpec((D, O_pad), lambda i: (0, 0)),
                pl.BlockSpec((1, O_pad), lambda i: (0, 0)),
            ],
            # Lane-dense output block: last dim is a multiple of 128.
            out_specs=pl.BlockSpec((tb, O_pad), lambda i: (i, 0)),
        ),
        compiler_params=pltpu.CompilerParams(
            # Batch tiles are independent -> shard across TensorCores.
            dimension_semantics=("parallel",),
        ),
    )(x, w_t, b_row)

    # Free layout plumbing: strip batch padding and the padded output lanes.
    return y_pad[:B, :O]


if __name__ == "__main__":
    # Module config: LinearModel(input_size=64, output_dim=2)
    input_size = 64
    output_dim = 2
    batch = 8

    key = jax.random.PRNGKey(0)
    kx, kw, kb = jax.random.split(key, 3)

    # Deterministic init mimicking PyTorch's default nn.Linear init:
    # U(-1/sqrt(fan_in), 1/sqrt(fan_in)).
    bound = 1.0 / (input_size ** 0.5)
    w = jax.random.uniform(kw, (output_dim, input_size), jnp.float32, -bound, bound)
    b = jax.random.uniform(kb, (output_dim,), jnp.float32, -bound, bound)

    x = jax.random.normal(kx, (batch, input_size), jnp.float32)

    y = linear_forward(x, w, b)
    jax.block_until_ready(y)

    # Reference check against plain JAX (same math as torch.nn.Linear).
    y_ref = x @ w.T + b
    assert y.shape == (batch, output_dim)
    assert jnp.allclose(y, y_ref, atol=1e-5, rtol=1e-5)

    print("KERNEL_OK")
</pallas_src>

<mosaic_0001>
module attributes {stable_mosaic.version = 11 : i64} {
  func.func @_linear_kernel(%arg0: i32, %arg1: memref<8x64xf32, #tpu.memory_space<vmem>>, %arg2: memref<64x128xf32, #tpu.memory_space<vmem>>, %arg3: memref<1x128xf32, #tpu.memory_space<vmem>>, %arg4: memref<8x128xf32, #tpu.memory_space<vmem>>) attributes {dimension_semantics = [#tpu.dimension_semantics<parallel>], iteration_bounds = array<i64: 1>, scalar_prefetch = 0 : i64, scratch_operands = 0 : i64, tpu.core_type = #tpu.core_type<tc>, window_params = [{transform_indices = @transform_0, window_bounds = array<i64: 8, 64>}, {pipeline_mode = #tpu.pipeline_mode<synchronous>, transform_indices = @transform_1, window_bounds = array<i64: 64, 128>}, {pipeline_mode = #tpu.pipeline_mode<synchronous>, transform_indices = @transform_2, window_bounds = array<i64: 1, 128>}, {transform_indices = @transform_3, window_bounds = array<i64: 8, 128>}]} {
    %c0 = arith.constant 0 : index
    %c0_0 = arith.constant 0 : index
    %0 = vector.load %arg1[%c0, %c0_0] : memref<8x64xf32, #tpu.memory_space<vmem>>, vector<8x64xf32>
    %c0_1 = arith.constant 0 : index
    %c0_2 = arith.constant 0 : index
    %1 = vector.load %arg2[%c0_1, %c0_2] : memref<64x128xf32, #tpu.memory_space<vmem>>, vector<64x128xf32>
    %cst = arith.constant dense<0.000000e+00> : vector<8x128xf32>
    %2 = tpu.matmul %0, %1, %cst {dimension_numbers = #tpu.dot_dimension_numbers<[1], [0], [0], [1], [0, 0, 1, 1], [], []>} : vector<8x64xf32>, vector<64x128xf32>, vector<8x128xf32> -> vector<8x128xf32>
    %c0_3 = arith.constant 0 : index
    %c0_4 = arith.constant 0 : index
    %3 = vector.load %arg3[%c0_3, %c0_4] : memref<1x128xf32, #tpu.memory_space<vmem>>, vector<1x128xf32>
    %4 = vector.broadcast %3 : vector<1x128xf32> to vector<8x128xf32>
    %5 = arith.addf %2, %4 : vector<8x128xf32>
    %c0_5 = arith.constant 0 : index
    %c0_6 = arith.constant 0 : index
    %6 = vector.load %arg4[%c0_5, %c0_6] : memref<8x128xf32, #tpu.memory_space<vmem>>, vector<8x128xf32>
    tpu.vector_store %arg4[%c0_5, %c0_6], %5 {strides = array<i32>} : memref<8x128xf32, #tpu.memory_space<vmem>>, vector<8x128xf32>,
    return
  }
  func.func @transform_0(%arg0: i32) -> (i32, i32) {
    %c0_i32 = arith.constant 0 : i32
    %c0_i32_0 = arith.constant 0 : i32
    return %arg0, %c0_i32 : i32, i32
  }
  func.func @transform_1(%arg0: i32) -> (i32, i32) {
    %c0_i32 = arith.constant 0 : i32
    %c0_i32_0 = arith.constant 0 : i32
    %c0_i32_1 = arith.constant 0 : i32
    return %c0_i32, %c0_i32_0 : i32, i32
  }
  func.func @transform_2(%arg0: i32) -> (i32, i32) {
    %c0_i32 = arith.constant 0 : i32
    %c0_i32_0 = arith.constant 0 : i32
    %c0_i32_1 = arith.constant 0 : i32
    return %c0_i32, %c0_i32_0 : i32, i32
  }
  func.func @transform_3(%arg0: i32) -> (i32, i32) {
    %c0_i32 = arith.constant 0 : i32
    %c0_i32_0 = arith.constant 0 : i32
    return %arg0, %c0_i32 : i32, i32
  }
}

</mosaic_0001>

<llo_original>
// kernel: linear_forward.1
$region0: #{linear_forward.1}
  #allocation0 [shape = 'u32[]', space=smem, size = 0x4, offset = 0x4, fixed_abs, tag = 'smem constant byte address 0x4 - core index']
  #allocation1 [shape = 'u32[144,128]{1,0:T(1,128)}', space=vmem, size = 0x12000, scoped, tag = 'internal scratch']
  %s0 = inlined_call_operand.vmem [shape: f32[8,64], index: 0, kind: input, shape index: {}]
  %s1 = inlined_call_operand.vmem [shape: f32[64,128], index: 1, kind: input, shape index: {}]
  %s2 = inlined_call_operand.vmem [shape: f32[1,128], index: 2, kind: input, shape index: {}]
  %s3 = inlined_call_operand.vmem [shape: f32[8,128], index: 3, kind: output, shape index: {}]
  %s4 = sld [smem:[#allocation0]]
  $region22: #{linear_forward.1} parent=0
    _
  %s6 = ssub.s32 1, %s4
  %s7 = scalar_select 0, %s6, %s4
  // Predicated region
  $region2: #{linear_forward.1} parent=0 // pred_check
    _
  $region3: #{linear_forward.1} parent=0 // pred_check_branch
    %9 = sbr.rel (0) target = $region5
  $region4: #{linear_forward.1} parent=0 // pred_region
    _
  $region5: #{linear_forward.1} parent=0 // pred_fallthru
    _
  // Predicated region
  $region6: #{linear_forward.1} parent=0 // pred_check
    _
  $region7: #{linear_forward.1} parent=0 // pred_check_branch
    %11 = sbr.rel (0) target = $region9
  $region8: #{linear_forward.1} parent=0 // pred_region
    _
  $region9: #{linear_forward.1} parent=0 // pred_fallthru
    _
  // Predicated region
  $region10: #{linear_forward.1} parent=0 // pred_check
    _
  $region11: #{linear_forward.1} parent=0 // pred_check_branch
    %13 = sbr.rel (0) target = $region13
  $region12: #{linear_forward.1} parent=0 // pred_region
    _
  $region13: #{linear_forward.1} parent=0 // pred_fallthru
    _
  %v14 = vld [vmem:[%s0] sm:$0xff]
  %v15 = vld [vmem:[%s1] sm:$0xff]
  %v16 = vld [vmem:[%s1 + $0x8] sm:$0xff]
  %v17 = vld [vmem:[%s1 + $0x10] sm:$0xff]
  %v18 = vld [vmem:[%s1 + $0x18] sm:$0xff]
  %v19 = vld [vmem:[%s1 + $0x20] sm:$0xff]
  %v20 = vld [vmem:[%s1 + $0x28] sm:$0xff]
  %v21 = vld [vmem:[%s1 + $0x30] sm:$0xff]
  %v22 = vld [vmem:[%s1 + $0x38] sm:$0xff]
  %v23 = vld [vmem:[%s2] sm:$0x1]
  %v25 = vlaneseq
  %v26 = vshrl.u32 %v25, 7
  %v27 = vsub.s32 0, %v26
  %v28 = vrot.slane %v23, %v27
  %vm30 = vcmask 523264
  %v32 = vsel %vm30, %v14, 0
  %34 = vmatprep.subr.mxu0 0.0
  %35 = vmatpush1.msra.mxu0 0.0
  %36 = vmatprep.subr.mxu0 0.0
  %37 = vmatpush1.msra.mxu0 0.0
  %38 = vmatprep.subr.mxu0 0.0
  %39 = vmatpush1.msra.mxu0 0.0
  %40 = vmatprep.subr.mxu0 0.0
  %41 = vmatpush1.msra.mxu0 0.0
  %42 = vmatprep.subr.mxu0 0.0
  %43 = vmatpush1.msra.mxu0 0.0
  %44 = vmatprep.subr.mxu0 0.0
  %45 = vmatpush1.msra.mxu0 0.0
  %46 = vmatprep.subr.mxu0 0.0
  %47 = vmatpush1.msra.mxu0 0.0
  %48 = vmatprep.subr.mxu0 0.0
  %49 = vmatpush1.msra.mxu0 0.0
  %50 = vmatprep.subr.mxu0 0.0
  %51 = vmatpush1.msra.mxu0 %v22
  %52 = vmatprep.subr.mxu0 0.0
  %53 = vmatpush1.msra.mxu0 %v21
  %54 = vmatprep.subr.mxu0 0.0
  %55 = vmatpush1.msra.mxu0 %v20
  %56 = vmatprep.subr.mxu0 0.0
  %57 = vmatpush1.msra.mxu0 %v19
  %58 = vmatprep.subr.mxu0 0.0
  %59 = vmatpush1.msra.mxu0 %v18
  %60 = vmatprep.subr.mxu0 0.0
  %61 = vmatpush1.msra.mxu0 %v17
  %62 = vmatprep.subr.mxu0 0.0
  %63 = vmatpush1.msra.mxu0 %v16
  %64 = vmatprep.subr.mxu0 0.0
  %65 = vmatpush1.msra.mxu0 %v15
  %66 = vmatprep.subr.mxu0 0.0
  %67 = vmatpush2.msra.mxu0 0.0
  %68 = vmatprep.subr.mxu0 0.0
  %69 = vmatpush2.msra.mxu0 0.0
  %70 = vmatprep.subr.mxu0 0.0
  %71 = vmatpush2.msra.mxu0 0.0
  %72 = vmatprep.subr.mxu0 0.0
  %73 = vmatpush2.msra.mxu0 0.0
  %74 = vmatprep.subr.mxu0 0.0
  %75 = vmatpush2.msra.mxu0 0.0
  %76 = vmatprep.subr.mxu0 0.0
  %77 = vmatpush2.msra.mxu0 0.0
  %78 = vmatprep.subr.mxu0 0.0
  %79 = vmatpush2.msra.mxu0 0.0
  %80 = vmatprep.subr.mxu0 0.0
  %81 = vmatpush2.msra.mxu0 0.0
  %82 = vmatprep.subr.mxu0 0.0
  %83 = vmatpush2.msra.mxu0 0.0
  %84 = vmatprep.subr.mxu0 0.0
  %85 = vmatpush2.msra.mxu0 0.0
  %86 = vmatprep.subr.mxu0 0.0
  %87 = vmatpush2.msra.mxu0 0.0
  %88 = vmatprep.subr.mxu0 0.0
  %89 = vmatpush2.msra.mxu0 0.0
  %90 = vmatprep.subr.mxu0 0.0
  %91 = vmatpush2.msra.mxu0 0.0
  %92 = vmatprep.subr.mxu0 0.0
  %93 = vmatpush2.msra.mxu0 0.0
  %94 = vmatprep.subr.mxu0 0.0
  %95 = vmatpush2.msra.mxu0 0.0
  %96 = vmatprep.subr.mxu0 0.0
  %97 = vmatpush2.msra.mxu0 0.0
  %98 = vmatprep.mubr.f32.mxu0 0.0
  %99 = vmatmul.mubr.f32.gmra.mxu0 %v32
  %v100 = vpop.f32.mrf.mxu0
  %v101 = vadd.f32 %v28, %v100
  %v102 = vpop.f32.mrf.mxu0
  %103 = vdwg.mxu0
  %104 = vst [vmem:[%s3] sm:$0xff] %v101
  // Predicated region
  $region14: #{linear_forward.1} parent=0 // pred_check
    _
  $region15: #{linear_forward.1} parent=0 // pred_check_branch
    %106 = sbr.rel (0) target = $region17
  $region16: #{linear_forward.1} parent=0 // pred_region
    _
  $region17: #{linear_forward.1} parent=0 // pred_fallthru
    _
  // Predicated region
  $region18: #{linear_forward.1} parent=0 // pred_check
    _
  $region19: #{linear_forward.1} parent=0 // pred_check_branch
    %108 = sbr.rel (0) target = $region21
  $region20: #{linear_forward.1} parent=0 // pred_region
    _
  $region21: #{linear_forward.1} parent=0 // pred_fallthru
    _

</llo_original>
